<compile_context>
chip_gen: v6e
topology: v6e:2x2x1
jax: 0.10.0
libtpu: 0.0.40
codegen_flags: <defaults>
</compile_context>

<pallas_src>
import functools

import jax
import jax.numpy as jnp
from jax.experimental import pallas as pl
from jax.experimental.pallas import tpu as pltpu


def _round_up(v: int, m: int) -> int:
    return -(-v // m) * m


def _make_moving_avg_kernel(kernel_size: int, pad: int, L: int, L_dense: int,
                            TB: int, C: int):
    """Kernel computing the dense (stride=1) moving average, L on lanes."""
    inv_k = 1.0 / kernel_size

    def kernel(x_ref, o_ref, buf_ref):
        # x_ref:   (TB, C, L)        lane-dense input block (time on lanes)
        # o_ref:   (TB, C, L_dense)  dense stride-1 output block
        # buf_ref: (TB, C, L_pad)    f32 scratch holding the padded sequence
        # ---- fused replication padding (VMEM only, no extra HBM traffic) --
        buf_ref[:, :, pl.ds(pad, L)] = x_ref[...].astype(jnp.float32)
        if pad > 0:
            front = x_ref[:, :, pl.ds(0, 1)].astype(jnp.float32)
            end = x_ref[:, :, pl.ds(L - 1, 1)].astype(jnp.float32)
            buf_ref[:, :, pl.ds(0, pad)] = jnp.broadcast_to(front, (TB, C, pad))
            buf_ref[:, :, pl.ds(pad + L, pad)] = jnp.broadcast_to(end, (TB, C, pad))

        # ---- direct k-term shifted add along the lane axis (static unroll).
        # Lane-offset slices lower to XLU rotates (idle slot here); the VPU
        # adds stream per-vreg, no scan / no in-place RAW hazard.
        acc = buf_ref[:, :, pl.ds(0, L_dense)]
        for j in range(1, kernel_size):
            acc = acc + buf_ref[:, :, pl.ds(j, L_dense)]
        o_ref[...] = (acc * inv_k).astype(o_ref.dtype)

    return kernel


def moving_avg(x: jax.Array, kernel_size: int, stride: int) -> jax.Array:
    """Moving-average trend extraction — matches the PyTorch module."""
    if kernel_size < 1 or stride < 1:
        raise ValueError("kernel_size and stride must be >= 1")
    B, L, C = x.shape
    pad = (kernel_size - 1) // 2
    L_pad = L + 2 * pad
    L_dense = L_pad - kernel_size + 1          # stride-1 output length
    if L_dense < 1:
        raise ValueError("kernel_size too large for this sequence length")

    # ---- generation-aware VMEM budget ---------------------------------
    try:
        vmem_cap = int(getattr(pltpu.get_tpu_info(), "vmem_capacity_bytes",
                               64 * 1024 * 1024))
    except Exception:
        vmem_cap = 64 * 1024 * 1024
    # 96 MiB limit on v5e/v6e (128 MiB phys), 48 MiB on v7x (64 MiB phys).
    vmem_limit = min((vmem_cap * 3) // 4, 96 * 1024 * 1024)
    budget = vmem_limit // 2                   # per-step working set target

    itemsize = jnp.dtype(x.dtype).itemsize
    pack = max(1, 4 // itemsize)               # sublane packing factor
    sub_io = _round_up(C, 8 * pack)            # sublane-padded channels (in/out)
    per_row = (2 * sub_io * _round_up(L, 128) * itemsize          # in, 2 bufs
               + 2 * sub_io * _round_up(L_dense, 128) * itemsize  # out, 2 bufs
               + _round_up(C, 8) * _round_up(L_pad, 128) * 4)     # f32 scratch
    tb_cap = max(1, budget // per_row)
    # >= 2 grid programs whenever possible so v7x's two TensorCores both work.
    tb_cap = min(tb_cap, max(1, -(-B // 2)))
    n_blocks = pl.cdiv(B, tb_cap)
    TB = pl.cdiv(B, n_blocks)                  # balanced batch tile
    grid = (pl.cdiv(B, TB),)

    kernel = _make_moving_avg_kernel(kernel_size, pad, L, L_dense, TB, C)

    # Lane-dense layout: time axis (large) on lanes, channels on sublanes.
    xt = jnp.transpose(x, (0, 2, 1))           # (B, C, L)

    dense_t = pl.pallas_call(
        kernel,
        out_shape=jax.ShapeDtypeStruct((B, C, L_dense), x.dtype),
        grid_spec=pltpu.PrefetchScalarGridSpec(
            num_scalar_prefetch=0,
            grid=grid,
            in_specs=[pl.BlockSpec((TB, C, L), lambda b: (b, 0, 0))],
            out_specs=pl.BlockSpec((TB, C, L_dense), lambda b: (b, 0, 0)),
            scratch_shapes=[pltpu.VMEM((TB, C, L_pad), jnp.float32)],
        ),
        compiler_params=pltpu.CompilerParams(
            dimension_semantics=("parallel",),
            vmem_limit_bytes=int(vmem_limit),
        ),
    )(xt)

    dense = jnp.transpose(dense_t, (0, 2, 1))  # back to (B, L_dense, C)
    if stride == 1:
        return dense
    # stride > 1 (unused by DLinear): subsample the dense result in JAX glue.
    return dense[:, ::stride, :]


def _moving_avg_ref(x: jax.Array, kernel_size: int, stride: int) -> jax.Array:
    """Pure-JAX reference (mirrors the PyTorch forward exactly), f32 math."""
    x = x.astype(jnp.float32)
    pad = (kernel_size - 1) // 2
    front = jnp.repeat(x[:, 0:1, :], pad, axis=1)
    end = jnp.repeat(x[:, -1:, :], pad, axis=1)
    x_pad = jnp.concatenate([front, x, end], axis=1)
    L_pad = x_pad.shape[1]
    L_out = (L_pad - kernel_size) // stride + 1
    outs = []
    for t in range(L_out):
        outs.append(jnp.mean(x_pad[:, t * stride:t * stride + kernel_size, :],
                             axis=1, keepdims=True))
    return jnp.concatenate(outs, axis=1)


if __name__ == "__main__":
    key = jax.random.PRNGKey(0)
    configs = [
        # (B, L, C, kernel_size, stride, dtype)
        (2, 16, 8, 5, 1, jnp.float32),    # small window
        (4, 48, 7, 25, 1, jnp.float32),   # DLinear default k=25
        (2, 32, 8, 25, 2, jnp.float32),   # stride > 1 -> wrapper subsample
        (2, 48, 7, 25, 1, jnp.bfloat16),  # low-precision input
    ]
    for (B, L, C, k, s, dt) in configs:
        key, sub = jax.random.split(key)
        x = jax.random.normal(sub, (B, L, C), dtype=jnp.float32).astype(dt)
        fn = jax.jit(functools.partial(moving_avg, kernel_size=k, stride=s))
        out = jax.block_until_ready(fn(x))
        ref = _moving_avg_ref(x, k, s)
        assert out.shape == ref.shape, (out.shape, ref.shape)
        tol = 1e-5 if dt == jnp.float32 else 3e-2
        assert jnp.allclose(out.astype(jnp.float32), ref,
                            atol=tol, rtol=tol), \
            f"mismatch vs reference for kernel_size={k}, stride={s}, dtype={dt}"
    print("KERNEL_OK")
</pallas_src>

<mosaic_0001>
module attributes {stable_mosaic.version = 11 : i64} {
  func.func @kernel(%arg0: i32, %arg1: memref<1x8x16xf32, #tpu.memory_space<vmem>>, %arg2: memref<1x8x16xf32, #tpu.memory_space<vmem>>, %arg3: memref<1x8x20xf32, #tpu.memory_space<vmem>>) attributes {dimension_semantics = [#tpu.dimension_semantics<parallel>], iteration_bounds = array<i64: 2>, scalar_prefetch = 0 : i64, scratch_operands = 1 : i64, tpu.core_type = #tpu.core_type<tc>, window_params = [{transform_indices = @transform_0, window_bounds = array<i64: 1, 8, 16>}, {transform_indices = @transform_1, window_bounds = array<i64: 1, 8, 16>}]} {
    %c0 = arith.constant 0 : index
    %c0_0 = arith.constant 0 : index
    %c0_1 = arith.constant 0 : index
    %0 = vector.load %arg1[%c0, %c0_0, %c0_1] : memref<1x8x16xf32, #tpu.memory_space<vmem>>, vector<1x8x16xf32>
    %c0_2 = arith.constant 0 : index
    %c0_3 = arith.constant 0 : index
    %c2 = arith.constant 2 : index
    %1 = vector.load %arg3[%c0_2, %c0_3, %c2] : memref<1x8x20xf32, #tpu.memory_space<vmem>>, vector<1x8x16xf32>
    tpu.vector_store %arg3[%c0_2, %c0_3, %c2], %0 {strides = array<i32>} : memref<1x8x20xf32, #tpu.memory_space<vmem>>, vector<1x8x16xf32>,
    %c0_4 = arith.constant 0 : index
    %c0_5 = arith.constant 0 : index
    %c0_6 = arith.constant 0 : index
    %2 = vector.load %arg1[%c0_4, %c0_5, %c0_6] : memref<1x8x16xf32, #tpu.memory_space<vmem>>, vector<1x8x1xf32>
    %c0_7 = arith.constant 0 : index
    %c0_8 = arith.constant 0 : index
    %c15 = arith.constant 15 : index
    %3 = vector.load %arg1[%c0_7, %c0_8, %c15] : memref<1x8x16xf32, #tpu.memory_space<vmem>>, vector<1x8x1xf32>
    %4 = vector.shape_cast %2 : vector<1x8x1xf32> to vector<1x8x1xf32>
    %5 = vector.broadcast %4 : vector<1x8x1xf32> to vector<1x8x2xf32>
    %c0_9 = arith.constant 0 : index
    %c0_10 = arith.constant 0 : index
    %c0_11 = arith.constant 0 : index
    %6 = vector.load %arg3[%c0_9, %c0_10, %c0_11] : memref<1x8x20xf32, #tpu.memory_space<vmem>>, vector<1x8x2xf32>
    tpu.vector_store %arg3[%c0_9, %c0_10, %c0_11], %5 {strides = array<i32>} : memref<1x8x20xf32, #tpu.memory_space<vmem>>, vector<1x8x2xf32>,
    %7 = vector.shape_cast %3 : vector<1x8x1xf32> to vector<1x8x1xf32>
    %8 = vector.broadcast %7 : vector<1x8x1xf32> to vector<1x8x2xf32>
    %c0_12 = arith.constant 0 : index
    %c0_13 = arith.constant 0 : index
    %c18 = arith.constant 18 : index
    %9 = vector.load %arg3[%c0_12, %c0_13, %c18] : memref<1x8x20xf32, #tpu.memory_space<vmem>>, vector<1x8x2xf32>
    tpu.vector_store %arg3[%c0_12, %c0_13, %c18], %8 {strides = array<i32>} : memref<1x8x20xf32, #tpu.memory_space<vmem>>, vector<1x8x2xf32>,
    %c0_14 = arith.constant 0 : index
    %c0_15 = arith.constant 0 : index
    %c0_16 = arith.constant 0 : index
    %10 = vector.load %arg3[%c0_14, %c0_15, %c0_16] : memref<1x8x20xf32, #tpu.memory_space<vmem>>, vector<1x8x16xf32>
    %c0_17 = arith.constant 0 : index
    %c0_18 = arith.constant 0 : index
    %c1 = arith.constant 1 : index
    %11 = vector.load %arg3[%c0_17, %c0_18, %c1] : memref<1x8x20xf32, #tpu.memory_space<vmem>>, vector<1x8x16xf32>
    %12 = arith.addf %10, %11 : vector<1x8x16xf32>
    %c0_19 = arith.constant 0 : index
    %c0_20 = arith.constant 0 : index
    %c2_21 = arith.constant 2 : index
    %13 = vector.load %arg3[%c0_19, %c0_20, %c2_21] : memref<1x8x20xf32, #tpu.memory_space<vmem>>, vector<1x8x16xf32>
    %14 = arith.addf %12, %13 : vector<1x8x16xf32>
    %c0_22 = arith.constant 0 : index
    %c0_23 = arith.constant 0 : index
    %c3 = arith.constant 3 : index
    %15 = vector.load %arg3[%c0_22, %c0_23, %c3] : memref<1x8x20xf32, #tpu.memory_space<vmem>>, vector<1x8x16xf32>
    %16 = arith.addf %14, %15 : vector<1x8x16xf32>
    %c0_24 = arith.constant 0 : index
    %c0_25 = arith.constant 0 : index
    %c4 = arith.constant 4 : index
    %17 = vector.load %arg3[%c0_24, %c0_25, %c4] : memref<1x8x20xf32, #tpu.memory_space<vmem>>, vector<1x8x16xf32>
    %18 = arith.addf %16, %17 : vector<1x8x16xf32>
    %cst = arith.constant 2.000000e-01 : f32
    %19 = vector.broadcast %cst : f32 to vector<1x8x16xf32>
    %20 = arith.mulf %18, %19 : vector<1x8x16xf32>
    %c0_26 = arith.constant 0 : index
    %c0_27 = arith.constant 0 : index
    %c0_28 = arith.constant 0 : index
    %21 = vector.load %arg2[%c0_26, %c0_27, %c0_28] : memref<1x8x16xf32, #tpu.memory_space<vmem>>, vector<1x8x16xf32>
    tpu.vector_store %arg2[%c0_26, %c0_27, %c0_28], %20 {strides = array<i32>} : memref<1x8x16xf32, #tpu.memory_space<vmem>>, vector<1x8x16xf32>,
    return
  }
  func.func @transform_0(%arg0: i32) -> (i32, i32, i32) {
    %c0_i32 = arith.constant 0 : i32
    %c0_i32_0 = arith.constant 0 : i32
    %c0_i32_1 = arith.constant 0 : i32
    return %arg0, %c0_i32, %c0_i32_0 : i32, i32, i32
  }
  func.func @transform_1(%arg0: i32) -> (i32, i32, i32) {
    %c0_i32 = arith.constant 0 : i32
    %c0_i32_0 = arith.constant 0 : i32
    %c0_i32_1 = arith.constant 0 : i32
    return %arg0, %c0_i32, %c0_i32_0 : i32, i32, i32
  }
}

</mosaic_0001>

<llo_original>
// kernel: moving_avg.1
$region0: #{moving_avg.1}
  #allocation0 [shape = 'u32[]', space=smem, size = 0x4, offset = 0x4, fixed_abs, tag = 'smem constant byte address 0x4 - core index']
  #allocation1 [shape = 'u32[144,128]{1,0:T(1,128)}', space=vmem, size = 0x12000, scoped, tag = 'internal scratch']
  #allocation2 [shape = 'f32[1,8,20]{2,1,0:T(8,128)}', space=vmem, size = 0x1000, scoped, tag = 'scratch operand']
  %s0 = inlined_call_operand.hbm [shape: f32[2,8,16], index: 0, kind: input, shape index: {}]
  %s1 = inlined_call_operand.hbm [shape: f32[2,8,16], index: 1, kind: output, shape index: {}]
  %s2 = sld [smem:[#allocation0]]
  $region41: #{moving_avg.1} parent=0
    _
  %s4 = ssub.s32 1, %s2
  %s5 = scalar_select 0, %s4, %s2
  $region1: #{moving_avg.1} parent=0
    #allocation3 [shape = 'u8[8192]{0}', space=vmem, size = 0x2000, scoped, tag = 'input window, operand 0']
    #allocation4 [shape = 's32[2]{0}', space=sflag, size = 0x8, scoped, tag = 'scoped memory for moving_avg.1']
    #allocation5 [shape = 's32[2]{0}', space=sflag, size = 0x8, scoped, tag = 'scoped memory for moving_avg.1']
    #allocation6 [shape = 'u8[8192]{0}', space=vmem, size = 0x2000, scoped, tag = 'output window, operand 0']
    %6 = vsyncpa [#allocation4], 0
    %s7 = scalar_lea.sflag [#allocation4], 1
    %8 = vsyncpa %s7, 0
    %9 = vsyncpa [#allocation5], 0
    %s10 = scalar_lea.sflag [#allocation5], 1
    %11 = vsyncpa %s10, 0
    loop: start=0, step=1, limit=4
    $region2: #{moving_avg.1} parent=1 // loop_pre_header
      _
    $region3: #{moving_avg.1} parent=1 // loop_header
      %s13 = sphi 0, %s17
      %p14 = scmp.ge.s32.totalorder %s13, 4
      %s23 = sphi 0, %s25
      %s26 = sphi 0, %s23
      %s27 = sphi 0, %s26
      %s43 = sphi 0, %s27
      %s49 = sphi 0, %s51
      %s52 = sphi 0, %s49
      %s53 = sphi 0, %s52
      %s69 = sphi 0, %s53
    $region4: #{moving_avg.1} parent=1 // loop_header_branch
      %16 = sbr.rel (%p14) target = $region8
    $region5: #{moving_avg.1} parent=1 // loop_body
      %s18 = ssub.s32 %s13, 1
      %s19 = ssub.s32 %s13, 2
      %s20 = sadd.s32 %s13, 1
      %s21 = ssub.s32 %s13, %s20
      %p22 = scmp.eq.s32.totalorder %s21, 0
      %s24 = sadd.s32 %s23, 1
      %s25 = scalar_select %p22, %s23, %s24
      %p28 = pneg %p22
      %p29 = scmp.eq.s32.totalorder %s13, 1
      %p30 = por %p28, %p29
      %p31 = scmp.ne.s32.totalorder %s23, %s26
      %p32 = scmp.eq.s32.totalorder %s13, 0
      %p33 = por %p31, %p32
      %p34 = scmp.ne.s32.totalorder %s23, %s26
      %p35 = scmp.eq.s32.totalorder %s18, 1
      %p36 = por %p34, %p35
      %p37 = scmp.ne.s32.totalorder %s26, %s27
      %p38 = scmp.eq.s32.totalorder %s18, 0
      %p39 = por %p37, %p38
      %p40 = scmp.ne.s32.totalorder %s26, %s27
      %p41 = scmp.eq.s32.totalorder %s19, 1
      %p42 = por %p40, %p41
      %p44 = scmp.ne.s32.totalorder %s27, %s43
      %p45 = scmp.eq.s32.totalorder %s19, 0
      %p46 = por %p44, %p45
      %s47 = ssub.s32 %s13, %s20
      %p48 = scmp.eq.s32.totalorder %s47, 0
      %s50 = sadd.s32 %s49, 1
      %s51 = scalar_select %p48, %s49, %s50
      %p54 = pneg %p48
      %p55 = scmp.eq.s32.totalorder %s13, 1
      %p56 = por %p54, %p55
      %p57 = scmp.ne.s32.totalorder %s49, %s52
      %p58 = scmp.eq.s32.totalorder %s13, 0
      %p59 = por %p57, %p58
      %p60 = scmp.ne.s32.totalorder %s49, %s52
      %p61 = scmp.eq.s32.totalorder %s18, 1
      %p62 = por %p60, %p61
      %p63 = scmp.ne.s32.totalorder %s52, %s53
      %p64 = scmp.eq.s32.totalorder %s18, 0
      %p65 = por %p63, %p64
      %p66 = scmp.ne.s32.totalorder %s52, %s53
      %p67 = scmp.eq.s32.totalorder %s19, 1
      %p68 = por %p66, %p67
      %p70 = scmp.ne.s32.totalorder %s53, %s69
      %p71 = scmp.eq.s32.totalorder %s19, 0
      %p72 = por %p70, %p71
      %p73 = scmp.le.s32.totalorder 1, %s13
      %p74 = scmp.lt.s32.totalorder %s13, 3
      %p75 = pnand %p73, %p74
      %p76 = pneg %p75
      // Predicated region
      $region9: #{moving_avg.1} parent=5 // pred_check
        _
      $region10: #{moving_avg.1} parent=5 // pred_check_branch
        %78 = sbr.rel (%p75) target = $region12
      $region11: #{moving_avg.1} parent=5 // pred_region
        %s79 = ssub.s32 %s13, 1
      $region12: #{moving_avg.1} parent=5 // pred_fallthru
        _
      %p80 = scmp.lt.s32.totalorder %s13, 2
      // Predicated region
      $region13: #{moving_avg.1} parent=5 // pred_check
        %p81 = pneg %p80
      $region14: #{moving_avg.1} parent=5 // pred_check_branch
        %83 = sbr.rel (%p81) target = $region16
      $region15: #{moving_avg.1} parent=5 // pred_region
        // Predicated region
        $region17: #{moving_avg.1} parent=15 // pred_check
          %p84 = pneg %p33
        $region18: #{moving_avg.1} parent=15 // pred_check_branch
          %86 = sbr.rel (%p84) target = $region20
        $region19: #{moving_avg.1} parent=15 // pred_region
          %s87 = sand.u32 %s23, 1
          %s88 = scalar_lea.sflag [#allocation4], %s87
          %s89 = sand.u32 %s23, 1
          %s90 = smul.addr %s89, 8
          %s91 = scalar_lea.vmem [#allocation3], %s90
          %s93 = ssub.s32 128, 128
          %94 = vsyncadd %s88, %s93
          %s95 = smul.addr %s13, 128
          %s96 = scalar_lea.hbm %s0, %s95
          %s98 = sshll.u32 %s91, 4
          %s99 = int_to_ptr.vmem [resolvable:$true] %s98
          %101 = dma.hbm_to_vmem [thread:$0]  %s96, 128, %s99, %s88
        $region20: #{moving_avg.1} parent=15 // pred_fallthru
          _
      $region16: #{moving_avg.1} parent=5 // pred_fallthru
        _
      %p102 = scmp.le.s32.totalorder 1, %s13
      %p103 = scmp.lt.s32.totalorder %s13, 3
      %p104 = pnand %p102, %p103
      %p105 = pneg %p104
      // Predicated region
      $region21: #{moving_avg.1} parent=5 // pred_check
        _
      $region22: #{moving_avg.1} parent=5 // pred_check_branch
        %107 = sbr.rel (%p104) target = $region24
      $region23: #{moving_avg.1} parent=5 // pred_region
        %s108 = ssub.s32 %s13, 1
        %s109 = sand.u32 %s26, 1
        %s110 = scalar_lea.sflag [#allocation4], %s109
        %s111 = sand.u32 %s26, 1
        %s112 = smul.addr %s111, 8
        %s113 = scalar_lea.vmem [#allocation3], %s112
        // Predicated region
        $region25: #{moving_avg.1} parent=23 // pred_check
          %p114 = pneg %p39
        $region26: #{moving_avg.1} parent=23 // pred_check_branch
          %116 = sbr.rel (%p114) target = $region28
        $region27: #{moving_avg.1} parent=23 // pred_region
          %117 = dma.done %s110, 128
        $region28: #{moving_avg.1} parent=23 // pred_fallthru
          _
        %s118 = sand.u32 %s26, 1
        %s119 = scalar_lea.sflag [#allocation4], %s118
        %s120 = sand.u32 %s26, 1
        %s121 = smul.addr %s120, 8
        %s122 = scalar_lea.vmem [#allocation3], %s121
        %p123 = pneg %p39
        %p124 = pneg %p36
        %p125 = pneg %p65
        %p126 = pneg %p62
        %s127 = sand.u32 %s52, 1
        %s128 = scalar_lea.sflag [#allocation5], %s127
        %s129 = sand.u32 %s52, 1
        %s130 = smul.addr %s129, 8
        %s131 = scalar_lea.vmem [#allocation6], %s130
        %v132 = vld [vmem:[%s113] sm:$0xff]
        %134 = vrot.lane.b32.xlu0 %v132, 2
        %v135 = vpop.permute.xlu0 %134
        %vm137 = vcmask 146448
        %138 = vst.msk [vmem:[#allocation2] sm:$0xff] %vm137, %v135
        %v139 = vld [vmem:[%s113] sm:$0xff]
        %141 = vset.pattern.permute.xlu0 0
        %142 = vperm.xlu0 %141, %v139
        %v143 = vpop.permute.xlu0 %142
        %vm145 = vcmask 15360
        %146 = vst.msk [vmem:[#allocation2] sm:$0xff] %vm145, %v143
        %147 = vset.pattern.permute.xlu0 15
        %148 = vperm.xlu0 %147, %v139
        %v149 = vpop.permute.xlu0 %148
        %vm151 = vcmask 162960
        %152 = vst.msk [vmem:[#allocation2] sm:$0xff] %vm151, %v149
        %v153 = vld [vmem:[#allocation2] sm:$0xff]
        %155 = vrot.lane.b32.xlu0 %v153, 127
        %v156 = vpop.permute.xlu0 %155
        %v158 = vadd.f32 %v153, %v156
        %159 = vrot.lane.b32.xlu0 %v153, 126
        %v160 = vpop.permute.xlu0 %159
        %v162 = vadd.f32 %v158, %v160
        %163 = vrot.lane.b32.xlu0 %v153, 125
        %v164 = vpop.permute.xlu0 %163
        %v166 = vadd.f32 %v162, %v164
        %167 = vrot.lane.b32.xlu0 %v153, 124
        %v168 = vpop.permute.xlu0 %167
        %v170 = vadd.f32 %v166, %v168
        %v171 = vmul.f32 %v170, 0.2
        %vm172 = vcmask 130048
        %173 = vst.msk [vmem:[%s131] sm:$0xff] %vm172, %v171
        %s174 = sand.u32 %s52, 1
        %s175 = scalar_lea.sflag [#allocation5], %s174
        %s176 = sand.u32 %s52, 1
        %s177 = smul.addr %s176, 8
        %s178 = scalar_lea.vmem [#allocation6], %s177
        // Predicated region
        $region29: #{moving_avg.1} parent=23 // pred_check
          %p179 = pneg %p62
        $region30: #{moving_avg.1} parent=23 // pred_check_branch
          %181 = sbr.rel (%p179) target = $region32
        $region31: #{moving_avg.1} parent=23 // pred_region
          %s183 = ssub.s32 128, 128
          %184 = vsyncadd %s175, %s183
          %s185 = smul.addr %s18, 128
          %s186 = scalar_lea.hbm %s1, %s185
          %s188 = sshll.u32 %s178, 4
          %s189 = int_to_ptr.vmem [resolvable:$true] %s188
          %191 = dma.vmem_to_hbm [thread:$0]  %s189, 128, %s186, %s175
        $region32: #{moving_avg.1} parent=23 // pred_fallthru
          _
      $region24: #{moving_avg.1} parent=5 // pred_fallthru
        _
      %p192 = scmp.le.s32.totalorder 2, %s13
      // Predicated region
      $region33: #{moving_avg.1} parent=5 // pred_check
        %p193 = pneg %p192
      $region34: #{moving_avg.1} parent=5 // pred_check_branch
        %195 = sbr.rel (%p193) target = $region36
      $region35: #{moving_avg.1} parent=5 // pred_region
        %s196 = ssub.s32 %s13, 2
        // Predicated region
        $region37: #{moving_avg.1} parent=35 // pred_check
          %p197 = pneg %p68
        $region38: #{moving_avg.1} parent=35 // pred_check_branch
          %199 = sbr.rel (%p197) target = $region40
        $region39: #{moving_avg.1} parent=35 // pred_region
          %s200 = sand.u32 %s53, 1
          %s201 = scalar_lea.sflag [#allocation5], %s200
          %s202 = sand.u32 %s53, 1
          %s203 = smul.addr %s202, 8
          %s204 = scalar_lea.vmem [#allocation6], %s203
          %205 = dma.done %s201, 128
        $region40: #{moving_avg.1} parent=35 // pred_fallthru
          _
      $region36: #{moving_avg.1} parent=5 // pred_fallthru
        _
    $region6: #{moving_avg.1} parent=1 // loop_footer
      %s17 = sadd.s32 1, %s13
    $region7: #{moving_avg.1} parent=1 // loop_footer_branch
      %12 = sbr.rel target = $region3
    $region8: #{moving_avg.1} parent=1 // loop_exit
      _
    %206 = vsyncpa [#allocation4], 1
    %s207 = scalar_lea.sflag [#allocation4], 1
    %208 = vsyncpa %s207, 1
    %209 = vsyncpa [#allocation5], 1
    %s210 = scalar_lea.sflag [#allocation5], 1
    %211 = vsyncpa %s210, 1

</llo_original>
